<compile_context>
chip_gen: v7x
topology: tpu7x:2x2x1
jax: 0.10.0
libtpu: 0.0.40
codegen_flags: <defaults>
</compile_context>

<pallas_src>
import functools

import jax
import jax.numpy as jnp
from jax.experimental import pallas as pl
from jax.experimental.pallas import tpu as pltpu

KH = KW = 3
CIN = 3
COUT = 6


def _conv_kernel(x_ref, w_ref, b_ref, o_ref, *, img_w: int, hw: int):
    """VPU shift-and-accumulate 3x3 conv on lane-dense flattened-spatial planes.

    x_ref: (1, CIN, HW_PAD)   right-padded input image (flat spatial on lanes)
    w_ref: (COUT, KH*KW*CIN)  weight columns, (kh, kw, ci) order
    b_ref: (COUT, 1)          bias
    o_ref: (1, COUT, HW)      full-width output slab (wrapper crops valid region)
    """
    xp = x_ref[0]                                              # (CIN, HW_PAD)
    w = w_ref[...]                                             # (COUT, 27)

    # Start the accumulator as the broadcast bias (lane-dense (COUT, HW) slab).
    acc = jnp.broadcast_to(b_ref[...], (COUT, hw)).astype(jnp.float32)

    # 27 broadcast multiply-adds on the VPU; no MXU push/pop, no per-tap reshapes.
    for kh in range(KH):
        for kw in range(KW):
            shift = kh * img_w + kw
            xs = xp[:, shift:shift + hw]                       # (CIN, HW) shifted plane
            for ci in range(CIN):
                k = (kh * KW + kw) * CIN + ci
                w_col = w[:, k:k + 1]                          # (COUT, 1)
                acc = acc + w_col * xs[ci:ci + 1, :]           # (COUT, HW) outer product

    o_ref[0] = acc.astype(o_ref.dtype)                         # unmasked full-lane store


def conv2d_pallas(x_nchw, w_oihw, bias):
    """Conv2d forward matching torch.nn.Conv2d(3, 6, 3, stride=1, padding=0).

    x_nchw: (N, 3, H, W) float32
    w_oihw: (6, 3, 3, 3) float32   (PyTorch OIHW weight layout)
    bias:   (6,) float32
    returns (N, 6, H-2, W-2) float32
    """
    n, cin, h, w = x_nchw.shape
    assert cin == CIN
    ho, wo = h - KH + 1, w - KW + 1
    hw = h * w

    # Pad the flat spatial axis so the largest tap shift is still an in-bounds
    # static slice of length HW, and the padded length is lane-tile aligned.
    max_shift = (KH - 1) * w + (KW - 1)
    hw_pad = pl.cdiv(hw + max_shift, 128) * 128

    # Keep NCHW; collapse (H, W) -> H*W (free reshape) + one cheap right-pad.
    x_flat = jnp.pad(x_nchw.reshape(n, CIN, hw),
                     ((0, 0), (0, 0), (0, hw_pad - hw)))
    # Tiny one-off weight re-pack: (COUT, (kh, kw, ci)) columns for the kernel.
    w_mat = jnp.transpose(w_oihw, (0, 2, 3, 1)).reshape(COUT, KH * KW * CIN)
    b_col = bias.reshape(COUT, 1)

    kernel = functools.partial(_conv_kernel, img_w=w, hw=hw)

    out_flat = pl.pallas_call(
        kernel,
        out_shape=jax.ShapeDtypeStruct((n, COUT, hw), x_nchw.dtype),
        grid_spec=pltpu.PrefetchScalarGridSpec(
            num_scalar_prefetch=0,
            grid=(n,),
            in_specs=[
                pl.BlockSpec((1, CIN, hw_pad), lambda i: (i, 0, 0)),
                pl.BlockSpec((COUT, KH * KW * CIN), lambda i: (0, 0)),
                pl.BlockSpec((COUT, 1), lambda i: (0, 0)),
            ],
            out_specs=pl.BlockSpec((1, COUT, hw), lambda i: (i, 0, 0)),
        ),
        compiler_params=pltpu.CompilerParams(
            dimension_semantics=("parallel",)),
    )(x_flat, w_mat, b_col)

    # Lane-dense (N, COUT, H*W) slab -> NCHW valid window (tiny crop, free reshape).
    return out_flat.reshape(n, COUT, h, w)[:, :, :ho, :wo]


if __name__ == "__main__":
    key = jax.random.PRNGKey(0)
    kx, kwt, kb = jax.random.split(key, 3)

    # Small deterministic example consistent with the module: N=2, C=3, H=W=16.
    N, H, W = 2, 16, 16
    x = jax.random.normal(kx, (N, CIN, H, W), dtype=jnp.float32)
    # Deterministic synthetic parameters (PyTorch shapes: weight OIHW, bias (Cout,)).
    fan_in = CIN * KH * KW
    bound = 1.0 / (fan_in ** 0.5)
    weight = jax.random.uniform(kwt, (COUT, CIN, KH, KW), jnp.float32, -bound, bound)
    bias = jax.random.uniform(kb, (COUT,), jnp.float32, -bound, bound)

    out = conv2d_pallas(x, weight, bias)
    out = jax.block_until_ready(out)

    # In-script correctness check against XLA's conv (NCHW / OIHW).
    ref = jax.lax.conv_general_dilated(
        x, weight, window_strides=(1, 1), padding="VALID",
        dimension_numbers=("NCHW", "OIHW", "NCHW"),
        precision=jax.lax.Precision.HIGHEST) + bias[None, :, None, None]
    assert out.shape == (N, COUT, H - 2, W - 2)
    assert jnp.allclose(out, ref, atol=1e-4, rtol=1e-4)

    print("KERNEL_OK")
</pallas_src>

<mosaic_0001>
module attributes {stable_mosaic.version = 11 : i64} {
  func.func @_conv_kernel(%arg0: i32, %arg1: memref<1x3x384xf32, #tpu.memory_space<vmem>>, %arg2: memref<6x27xf32, #tpu.memory_space<vmem>>, %arg3: memref<6x1xf32, #tpu.memory_space<vmem>>, %arg4: memref<1x6x256xf32, #tpu.memory_space<vmem>>) attributes {dimension_semantics = [#tpu.dimension_semantics<parallel>], iteration_bounds = array<i64: 2>, scalar_prefetch = 0 : i64, scratch_operands = 0 : i64, tpu.core_type = #tpu.core_type<tc>, window_params = [{transform_indices = @transform_0, window_bounds = array<i64: 1, 3, 384>}, {pipeline_mode = #tpu.pipeline_mode<synchronous>, transform_indices = @transform_1, window_bounds = array<i64: 6, 27>}, {pipeline_mode = #tpu.pipeline_mode<synchronous>, transform_indices = @transform_2, window_bounds = array<i64: 6, 1>}, {transform_indices = @transform_3, window_bounds = array<i64: 1, 6, 256>}]} {
    %c0 = arith.constant 0 : index
    %c0_0 = arith.constant 0 : index
    %c0_1 = arith.constant 0 : index
    %0 = vector.load %arg1[%c0, %c0_0, %c0_1] : memref<1x3x384xf32, #tpu.memory_space<vmem>>, vector<1x3x384xf32>
    %1 = vector.shape_cast %0 : vector<1x3x384xf32> to vector<3x384xf32>
    %c0_2 = arith.constant 0 : index
    %c0_3 = arith.constant 0 : index
    %2 = vector.load %arg2[%c0_2, %c0_3] : memref<6x27xf32, #tpu.memory_space<vmem>>, vector<6x27xf32>
    %c0_4 = arith.constant 0 : index
    %c0_5 = arith.constant 0 : index
    %3 = vector.load %arg3[%c0_4, %c0_5] : memref<6x1xf32, #tpu.memory_space<vmem>>, vector<6x1xf32>
    %4 = vector.shape_cast %3 : vector<6x1xf32> to vector<6x1xf32>
    %5 = vector.broadcast %4 : vector<6x1xf32> to vector<6x256xf32>
    %6 = vector.extract_strided_slice %1 {offsets = [0, 0], sizes = [3, 256], strides = [1, 1]} : vector<3x384xf32> to vector<3x256xf32>
    %7 = vector.extract_strided_slice %2 {offsets = [0, 0], sizes = [6, 1], strides = [1, 1]} : vector<6x27xf32> to vector<6x1xf32>
    %8 = vector.extract_strided_slice %6 {offsets = [0, 0], sizes = [1, 256], strides = [1, 1]} : vector<3x256xf32> to vector<1x256xf32>
    %9 = vector.broadcast %7 : vector<6x1xf32> to vector<6x256xf32>
    %10 = vector.broadcast %8 : vector<1x256xf32> to vector<6x256xf32>
    %11 = arith.mulf %9, %10 : vector<6x256xf32>
    %12 = arith.addf %5, %11 : vector<6x256xf32>
    %13 = vector.extract_strided_slice %2 {offsets = [0, 1], sizes = [6, 1], strides = [1, 1]} : vector<6x27xf32> to vector<6x1xf32>
    %14 = vector.extract_strided_slice %6 {offsets = [1, 0], sizes = [1, 256], strides = [1, 1]} : vector<3x256xf32> to vector<1x256xf32>
    %15 = vector.broadcast %13 : vector<6x1xf32> to vector<6x256xf32>
    %16 = vector.broadcast %14 : vector<1x256xf32> to vector<6x256xf32>
    %17 = arith.mulf %15, %16 : vector<6x256xf32>
    %18 = arith.addf %12, %17 : vector<6x256xf32>
    %19 = vector.extract_strided_slice %2 {offsets = [0, 2], sizes = [6, 1], strides = [1, 1]} : vector<6x27xf32> to vector<6x1xf32>
    %20 = vector.extract_strided_slice %6 {offsets = [2, 0], sizes = [1, 256], strides = [1, 1]} : vector<3x256xf32> to vector<1x256xf32>
    %21 = vector.broadcast %19 : vector<6x1xf32> to vector<6x256xf32>
    %22 = vector.broadcast %20 : vector<1x256xf32> to vector<6x256xf32>
    %23 = arith.mulf %21, %22 : vector<6x256xf32>
    %24 = arith.addf %18, %23 : vector<6x256xf32>
    %25 = vector.extract_strided_slice %1 {offsets = [0, 1], sizes = [3, 256], strides = [1, 1]} : vector<3x384xf32> to vector<3x256xf32>
    %26 = vector.extract_strided_slice %2 {offsets = [0, 3], sizes = [6, 1], strides = [1, 1]} : vector<6x27xf32> to vector<6x1xf32>
    %27 = vector.extract_strided_slice %25 {offsets = [0, 0], sizes = [1, 256], strides = [1, 1]} : vector<3x256xf32> to vector<1x256xf32>
    %28 = vector.broadcast %26 : vector<6x1xf32> to vector<6x256xf32>
    %29 = vector.broadcast %27 : vector<1x256xf32> to vector<6x256xf32>
    %30 = arith.mulf %28, %29 : vector<6x256xf32>
    %31 = arith.addf %24, %30 : vector<6x256xf32>
    %32 = vector.extract_strided_slice %2 {offsets = [0, 4], sizes = [6, 1], strides = [1, 1]} : vector<6x27xf32> to vector<6x1xf32>
    %33 = vector.extract_strided_slice %25 {offsets = [1, 0], sizes = [1, 256], strides = [1, 1]} : vector<3x256xf32> to vector<1x256xf32>
    %34 = vector.broadcast %32 : vector<6x1xf32> to vector<6x256xf32>
    %35 = vector.broadcast %33 : vector<1x256xf32> to vector<6x256xf32>
    %36 = arith.mulf %34, %35 : vector<6x256xf32>
    %37 = arith.addf %31, %36 : vector<6x256xf32>
    %38 = vector.extract_strided_slice %2 {offsets = [0, 5], sizes = [6, 1], strides = [1, 1]} : vector<6x27xf32> to vector<6x1xf32>
    %39 = vector.extract_strided_slice %25 {offsets = [2, 0], sizes = [1, 256], strides = [1, 1]} : vector<3x256xf32> to vector<1x256xf32>
    %40 = vector.broadcast %38 : vector<6x1xf32> to vector<6x256xf32>
    %41 = vector.broadcast %39 : vector<1x256xf32> to vector<6x256xf32>
    %42 = arith.mulf %40, %41 : vector<6x256xf32>
    %43 = arith.addf %37, %42 : vector<6x256xf32>
    %44 = vector.extract_strided_slice %1 {offsets = [0, 2], sizes = [3, 256], strides = [1, 1]} : vector<3x384xf32> to vector<3x256xf32>
    %45 = vector.extract_strided_slice %2 {offsets = [0, 6], sizes = [6, 1], strides = [1, 1]} : vector<6x27xf32> to vector<6x1xf32>
    %46 = vector.extract_strided_slice %44 {offsets = [0, 0], sizes = [1, 256], strides = [1, 1]} : vector<3x256xf32> to vector<1x256xf32>
    %47 = vector.broadcast %45 : vector<6x1xf32> to vector<6x256xf32>
    %48 = vector.broadcast %46 : vector<1x256xf32> to vector<6x256xf32>
    %49 = arith.mulf %47, %48 : vector<6x256xf32>
    %50 = arith.addf %43, %49 : vector<6x256xf32>
    %51 = vector.extract_strided_slice %2 {offsets = [0, 7], sizes = [6, 1], strides = [1, 1]} : vector<6x27xf32> to vector<6x1xf32>
    %52 = vector.extract_strided_slice %44 {offsets = [1, 0], sizes = [1, 256], strides = [1, 1]} : vector<3x256xf32> to vector<1x256xf32>
    %53 = vector.broadcast %51 : vector<6x1xf32> to vector<6x256xf32>
    %54 = vector.broadcast %52 : vector<1x256xf32> to vector<6x256xf32>
    %55 = arith.mulf %53, %54 : vector<6x256xf32>
    %56 = arith.addf %50, %55 : vector<6x256xf32>
    %57 = vector.extract_strided_slice %2 {offsets = [0, 8], sizes = [6, 1], strides = [1, 1]} : vector<6x27xf32> to vector<6x1xf32>
    %58 = vector.extract_strided_slice %44 {offsets = [2, 0], sizes = [1, 256], strides = [1, 1]} : vector<3x256xf32> to vector<1x256xf32>
    %59 = vector.broadcast %57 : vector<6x1xf32> to vector<6x256xf32>
    %60 = vector.broadcast %58 : vector<1x256xf32> to vector<6x256xf32>
    %61 = arith.mulf %59, %60 : vector<6x256xf32>
    %62 = arith.addf %56, %61 : vector<6x256xf32>
    %63 = vector.extract_strided_slice %1 {offsets = [0, 16], sizes = [3, 256], strides = [1, 1]} : vector<3x384xf32> to vector<3x256xf32>
    %64 = vector.extract_strided_slice %2 {offsets = [0, 9], sizes = [6, 1], strides = [1, 1]} : vector<6x27xf32> to vector<6x1xf32>
    %65 = vector.extract_strided_slice %63 {offsets = [0, 0], sizes = [1, 256], strides = [1, 1]} : vector<3x256xf32> to vector<1x256xf32>
    %66 = vector.broadcast %64 : vector<6x1xf32> to vector<6x256xf32>
    %67 = vector.broadcast %65 : vector<1x256xf32> to vector<6x256xf32>
    %68 = arith.mulf %66, %67 : vector<6x256xf32>
    %69 = arith.addf %62, %68 : vector<6x256xf32>
    %70 = vector.extract_strided_slice %2 {offsets = [0, 10], sizes = [6, 1], strides = [1, 1]} : vector<6x27xf32> to vector<6x1xf32>
    %71 = vector.extract_strided_slice %63 {offsets = [1, 0], sizes = [1, 256], strides = [1, 1]} : vector<3x256xf32> to vector<1x256xf32>
    %72 = vector.broadcast %70 : vector<6x1xf32> to vector<6x256xf32>
    %73 = vector.broadcast %71 : vector<1x256xf32> to vector<6x256xf32>
    %74 = arith.mulf %72, %73 : vector<6x256xf32>
    %75 = arith.addf %69, %74 : vector<6x256xf32>
    %76 = vector.extract_strided_slice %2 {offsets = [0, 11], sizes = [6, 1], strides = [1, 1]} : vector<6x27xf32> to vector<6x1xf32>
    %77 = vector.extract_strided_slice %63 {offsets = [2, 0], sizes = [1, 256], strides = [1, 1]} : vector<3x256xf32> to vector<1x256xf32>
    %78 = vector.broadcast %76 : vector<6x1xf32> to vector<6x256xf32>
    %79 = vector.broadcast %77 : vector<1x256xf32> to vector<6x256xf32>
    %80 = arith.mulf %78, %79 : vector<6x256xf32>
    %81 = arith.addf %75, %80 : vector<6x256xf32>
    %82 = vector.extract_strided_slice %1 {offsets = [0, 17], sizes = [3, 256], strides = [1, 1]} : vector<3x384xf32> to vector<3x256xf32>
    %83 = vector.extract_strided_slice %2 {offsets = [0, 12], sizes = [6, 1], strides = [1, 1]} : vector<6x27xf32> to vector<6x1xf32>
    %84 = vector.extract_strided_slice %82 {offsets = [0, 0], sizes = [1, 256], strides = [1, 1]} : vector<3x256xf32> to vector<1x256xf32>
    %85 = vector.broadcast %83 : vector<6x1xf32> to vector<6x256xf32>
    %86 = vector.broadcast %84 : vector<1x256xf32> to vector<6x256xf32>
    %87 = arith.mulf %85, %86 : vector<6x256xf32>
    %88 = arith.addf %81, %87 : vector<6x256xf32>
    %89 = vector.extract_strided_slice %2 {offsets = [0, 13], sizes = [6, 1], strides = [1, 1]} : vector<6x27xf32> to vector<6x1xf32>
    %90 = vector.extract_strided_slice %82 {offsets = [1, 0], sizes = [1, 256], strides = [1, 1]} : vector<3x256xf32> to vector<1x256xf32>
    %91 = vector.broadcast %89 : vector<6x1xf32> to vector<6x256xf32>
    %92 = vector.broadcast %90 : vector<1x256xf32> to vector<6x256xf32>
    %93 = arith.mulf %91, %92 : vector<6x256xf32>
    %94 = arith.addf %88, %93 : vector<6x256xf32>
    %95 = vector.extract_strided_slice %2 {offsets = [0, 14], sizes = [6, 1], strides = [1, 1]} : vector<6x27xf32> to vector<6x1xf32>
    %96 = vector.extract_strided_slice %82 {offsets = [2, 0], sizes = [1, 256], strides = [1, 1]} : vector<3x256xf32> to vector<1x256xf32>
    %97 = vector.broadcast %95 : vector<6x1xf32> to vector<6x256xf32>
    %98 = vector.broadcast %96 : vector<1x256xf32> to vector<6x256xf32>
    %99 = arith.mulf %97, %98 : vector<6x256xf32>
    %100 = arith.addf %94, %99 : vector<6x256xf32>
    %101 = vector.extract_strided_slice %1 {offsets = [0, 18], sizes = [3, 256], strides = [1, 1]} : vector<3x384xf32> to vector<3x256xf32>
    %102 = vector.extract_strided_slice %2 {offsets = [0, 15], sizes = [6, 1], strides = [1, 1]} : vector<6x27xf32> to vector<6x1xf32>
    %103 = vector.extract_strided_slice %101 {offsets = [0, 0], sizes = [1, 256], strides = [1, 1]} : vector<3x256xf32> to vector<1x256xf32>
    %104 = vector.broadcast %102 : vector<6x1xf32> to vector<6x256xf32>
    %105 = vector.broadcast %103 : vector<1x256xf32> to vector<6x256xf32>
    %106 = arith.mulf %104, %105 : vector<6x256xf32>
    %107 = arith.addf %100, %106 : vector<6x256xf32>
    %108 = vector.extract_strided_slice %2 {offsets = [0, 16], sizes = [6, 1], strides = [1, 1]} : vector<6x27xf32> to vector<6x1xf32>
    %109 = vector.extract_strided_slice %101 {offsets = [1, 0], sizes = [1, 256], strides = [1, 1]} : vector<3x256xf32> to vector<1x256xf32>
    %110 = vector.broadcast %108 : vector<6x1xf32> to vector<6x256xf32>
    %111 = vector.broadcast %109 : vector<1x256xf32> to vector<6x256xf32>
    %112 = arith.mulf %110, %111 : vector<6x256xf32>
    %113 = arith.addf %107, %112 : vector<6x256xf32>
    %114 = vector.extract_strided_slice %2 {offsets = [0, 17], sizes = [6, 1], strides = [1, 1]} : vector<6x27xf32> to vector<6x1xf32>
    %115 = vector.extract_strided_slice %101 {offsets = [2, 0], sizes = [1, 256], strides = [1, 1]} : vector<3x256xf32> to vector<1x256xf32>
    %116 = vector.broadcast %114 : vector<6x1xf32> to vector<6x256xf32>
    %117 = vector.broadcast %115 : vector<1x256xf32> to vector<6x256xf32>
    %118 = arith.mulf %116, %117 : vector<6x256xf32>
    %119 = arith.addf %113, %118 : vector<6x256xf32>
    %120 = vector.extract_strided_slice %1 {offsets = [0, 32], sizes = [3, 256], strides = [1, 1]} : vector<3x384xf32> to vector<3x256xf32>
    %121 = vector.extract_strided_slice %2 {offsets = [0, 18], sizes = [6, 1], strides = [1, 1]} : vector<6x27xf32> to vector<6x1xf32>
    %122 = vector.extract_strided_slice %120 {offsets = [0, 0], sizes = [1, 256], strides = [1, 1]} : vector<3x256xf32> to vector<1x256xf32>
    %123 = vector.broadcast %121 : vector<6x1xf32> to vector<6x256xf32>
    %124 = vector.broadcast %122 : vector<1x256xf32> to vector<6x256xf32>
    %125 = arith.mulf %123, %124 : vector<6x256xf32>
    %126 = arith.addf %119, %125 : vector<6x256xf32>
    %127 = vector.extract_strided_slice %2 {offsets = [0, 19], sizes = [6, 1], strides = [1, 1]} : vector<6x27xf32> to vector<6x1xf32>
    %128 = vector.extract_strided_slice %120 {offsets = [1, 0], sizes = [1, 256], strides = [1, 1]} : vector<3x256xf32> to vector<1x256xf32>
    %129 = vector.broadcast %127 : vector<6x1xf32> to vector<6x256xf32>
    %130 = vector.broadcast %128 : vector<1x256xf32> to vector<6x256xf32>
    %131 = arith.mulf %129, %130 : vector<6x256xf32>
    %132 = arith.addf %126, %131 : vector<6x256xf32>
    %133 = vector.extract_strided_slice %2 {offsets = [0, 20], sizes = [6, 1], strides = [1, 1]} : vector<6x27xf32> to vector<6x1xf32>
    %134 = vector.extract_strided_slice %120 {offsets = [2, 0], sizes = [1, 256], strides = [1, 1]} : vector<3x256xf32> to vector<1x256xf32>
    %135 = vector.broadcast %133 : vector<6x1xf32> to vector<6x256xf32>
    %136 = vector.broadcast %134 : vector<1x256xf32> to vector<6x256xf32>
    %137 = arith.mulf %135, %136 : vector<6x256xf32>
    %138 = arith.addf %132, %137 : vector<6x256xf32>
    %139 = vector.extract_strided_slice %1 {offsets = [0, 33], sizes = [3, 256], strides = [1, 1]} : vector<3x384xf32> to vector<3x256xf32>
    %140 = vector.extract_strided_slice %2 {offsets = [0, 21], sizes = [6, 1], strides = [1, 1]} : vector<6x27xf32> to vector<6x1xf32>
    %141 = vector.extract_strided_slice %139 {offsets = [0, 0], sizes = [1, 256], strides = [1, 1]} : vector<3x256xf32> to vector<1x256xf32>
    %142 = vector.broadcast %140 : vector<6x1xf32> to vector<6x256xf32>
    %143 = vector.broadcast %141 : vector<1x256xf32> to vector<6x256xf32>
    %144 = arith.mulf %142, %143 : vector<6x256xf32>
    %145 = arith.addf %138, %144 : vector<6x256xf32>
    %146 = vector.extract_strided_slice %2 {offsets = [0, 22], sizes = [6, 1], strides = [1, 1]} : vector<6x27xf32> to vector<6x1xf32>
    %147 = vector.extract_strided_slice %139 {offsets = [1, 0], sizes = [1, 256], strides = [1, 1]} : vector<3x256xf32> to vector<1x256xf32>
    %148 = vector.broadcast %146 : vector<6x1xf32> to vector<6x256xf32>
    %149 = vector.broadcast %147 : vector<1x256xf32> to vector<6x256xf32>
    %150 = arith.mulf %148, %149 : vector<6x256xf32>
    %151 = arith.addf %145, %150 : vector<6x256xf32>
    %152 = vector.extract_strided_slice %2 {offsets = [0, 23], sizes = [6, 1], strides = [1, 1]} : vector<6x27xf32> to vector<6x1xf32>
    %153 = vector.extract_strided_slice %139 {offsets = [2, 0], sizes = [1, 256], strides = [1, 1]} : vector<3x256xf32> to vector<1x256xf32>
    %154 = vector.broadcast %152 : vector<6x1xf32> to vector<6x256xf32>
    %155 = vector.broadcast %153 : vector<1x256xf32> to vector<6x256xf32>
    %156 = arith.mulf %154, %155 : vector<6x256xf32>
    %157 = arith.addf %151, %156 : vector<6x256xf32>
    %158 = vector.extract_strided_slice %1 {offsets = [0, 34], sizes = [3, 256], strides = [1, 1]} : vector<3x384xf32> to vector<3x256xf32>
    %159 = vector.extract_strided_slice %2 {offsets = [0, 24], sizes = [6, 1], strides = [1, 1]} : vector<6x27xf32> to vector<6x1xf32>
    %160 = vector.extract_strided_slice %158 {offsets = [0, 0], sizes = [1, 256], strides = [1, 1]} : vector<3x256xf32> to vector<1x256xf32>
    %161 = vector.broadcast %159 : vector<6x1xf32> to vector<6x256xf32>
    %162 = vector.broadcast %160 : vector<1x256xf32> to vector<6x256xf32>
    %163 = arith.mulf %161, %162 : vector<6x256xf32>
    %164 = arith.addf %157, %163 : vector<6x256xf32>
    %165 = vector.extract_strided_slice %2 {offsets = [0, 25], sizes = [6, 1], strides = [1, 1]} : vector<6x27xf32> to vector<6x1xf32>
    %166 = vector.extract_strided_slice %158 {offsets = [1, 0], sizes = [1, 256], strides = [1, 1]} : vector<3x256xf32> to vector<1x256xf32>
    %167 = vector.broadcast %165 : vector<6x1xf32> to vector<6x256xf32>
    %168 = vector.broadcast %166 : vector<1x256xf32> to vector<6x256xf32>
    %169 = arith.mulf %167, %168 : vector<6x256xf32>
    %170 = arith.addf %164, %169 : vector<6x256xf32>
    %171 = vector.extract_strided_slice %2 {offsets = [0, 26], sizes = [6, 1], strides = [1, 1]} : vector<6x27xf32> to vector<6x1xf32>
    %172 = vector.extract_strided_slice %158 {offsets = [2, 0], sizes = [1, 256], strides = [1, 1]} : vector<3x256xf32> to vector<1x256xf32>
    %173 = vector.broadcast %171 : vector<6x1xf32> to vector<6x256xf32>
    %174 = vector.broadcast %172 : vector<1x256xf32> to vector<6x256xf32>
    %175 = arith.mulf %173, %174 : vector<6x256xf32>
    %176 = arith.addf %170, %175 : vector<6x256xf32>
    %c0_6 = arith.constant 0 : index
    %c0_7 = arith.constant 0 : index
    %c0_8 = arith.constant 0 : index
    %177 = vector.load %arg4[%c0_6, %c0_7, %c0_8] : memref<1x6x256xf32, #tpu.memory_space<vmem>>, vector<1x6x256xf32>
    %178 = vector.shape_cast %177 : vector<1x6x256xf32> to vector<6x256xf32>
    %179 = vector.shape_cast %176 : vector<6x256xf32> to vector<1x6x256xf32>
    tpu.vector_store %arg4[%c0_6, %c0_7, %c0_8], %179 {strides = array<i32>} : memref<1x6x256xf32, #tpu.memory_space<vmem>>, vector<1x6x256xf32>,
    return
  }
  func.func @transform_0(%arg0: i32) -> (i32, i32, i32) {
    %c0_i32 = arith.constant 0 : i32
    %c0_i32_0 = arith.constant 0 : i32
    %c0_i32_1 = arith.constant 0 : i32
    return %arg0, %c0_i32, %c0_i32_0 : i32, i32, i32
  }
  func.func @transform_1(%arg0: i32) -> (i32, i32) {
    %c0_i32 = arith.constant 0 : i32
    %c0_i32_0 = arith.constant 0 : i32
    %c0_i32_1 = arith.constant 0 : i32
    return %c0_i32, %c0_i32_0 : i32, i32
  }
  func.func @transform_2(%arg0: i32) -> (i32, i32) {
    %c0_i32 = arith.constant 0 : i32
    %c0_i32_0 = arith.constant 0 : i32
    %c0_i32_1 = arith.constant 0 : i32
    return %c0_i32, %c0_i32_0 : i32, i32
  }
  func.func @transform_3(%arg0: i32) -> (i32, i32, i32) {
    %c0_i32 = arith.constant 0 : i32
    %c0_i32_0 = arith.constant 0 : i32
    %c0_i32_1 = arith.constant 0 : i32
    return %arg0, %c0_i32, %c0_i32_0 : i32, i32, i32
  }
}

</mosaic_0001>

<llo_original>
// kernel: tpu_custom_call.1
$region0: #{tpu_custom_call.1}
  #allocation0 [shape = 'u32[]', space=smem, size = 0x4, offset = 0x4, fixed_abs, tag = 'smem constant byte address 0x4 - core index']
  #allocation1 [shape = 'u32[144,128]{1,0:T(1,128)}', space=vmem, size = 0x12000, scoped, tag = 'internal scratch']
  %s0 = inlined_call_operand.vmem [shape: f32[2,3,384], index: 0, kind: input, shape index: {}]
  %s1 = inlined_call_operand.vmem [shape: f32[6,27], index: 1, kind: input, shape index: {}]
  %s2 = inlined_call_operand.vmem [shape: f32[6,1], index: 2, kind: input, shape index: {}]
  %s3 = inlined_call_operand.vmem [shape: f32[2,6,256], index: 3, kind: output, shape index: {}]
  %s4 = sld [smem:[#allocation0]]
  $region45: #{tpu_custom_call.1} parent=0
    _
  %s6 = ssub.s32 1, %s4
  %s7 = scalar_select 0, %s6, %s4
  loop: start=0, step=1, limit=4
  $region2: #{tpu_custom_call.1} parent=0 // loop_pre_header
    _
  $region3: #{tpu_custom_call.1} parent=0 // loop_header
    %s9 = sphi 0, %s13
    %p10 = scmp.ge.s32.totalorder %s9, 4
    %s19 = sphi 0, %s21
    %s22 = sphi 0, %s19
    %s23 = sphi 0, %s22
    %s39 = sphi 0, %s23
    %s43 = sphi 0, %s43
    %s45 = sphi 0, %s43
    %s46 = sphi 0, %s45
    %s60 = sphi 0, %s46
    %s64 = sphi 0, %s64
    %s66 = sphi 0, %s64
    %s67 = sphi 0, %s66
    %s81 = sphi 0, %s67
    %s87 = sphi 0, %s89
    %s90 = sphi 0, %s87
    %s91 = sphi 0, %s90
    %s107 = sphi 0, %s91
  $region4: #{tpu_custom_call.1} parent=0 // loop_header_branch
    %12 = sbr.rel (%p10) target = $region8
  $region5: #{tpu_custom_call.1} parent=0 // loop_body
    %s14 = ssub.s32 %s9, 1
    %s15 = ssub.s32 %s9, 2
    %s16 = sadd.s32 %s9, 1
    %s17 = ssub.s32 %s9, %s16
    %p18 = scmp.eq.s32.totalorder %s17, 0
    %s20 = sadd.s32 %s19, 1
    %s21 = scalar_select %p18, %s19, %s20
    %p24 = pneg %p18
    %p25 = scmp.eq.s32.totalorder %s9, 1
    %p26 = por %p24, %p25
    %p27 = scmp.ne.s32.totalorder %s19, %s22
    %p28 = scmp.eq.s32.totalorder %s9, 0
    %p29 = por %p27, %p28
    %p30 = scmp.ne.s32.totalorder %s19, %s22
    %p31 = scmp.eq.s32.totalorder %s14, 1
    %p32 = por %p30, %p31
    %p33 = scmp.ne.s32.totalorder %s22, %s23
    %p34 = scmp.eq.s32.totalorder %s14, 0
    %p35 = por %p33, %p34
    %p36 = scmp.ne.s32.totalorder %s22, %s23
    %p37 = scmp.eq.s32.totalorder %s15, 1
    %p38 = por %p36, %p37
    %p40 = scmp.ne.s32.totalorder %s23, %s39
    %p41 = scmp.eq.s32.totalorder %s15, 0
    %p42 = por %p40, %p41
    %s44 = sadd.s32 %s43, 1
    %p47 = scmp.eq.s32.totalorder %s9, 1
    %p48 = scmp.ne.s32.totalorder %s43, %s45
    %p49 = scmp.eq.s32.totalorder %s9, 0
    %p50 = por %p48, %p49
    %p51 = scmp.ne.s32.totalorder %s43, %s45
    %p52 = scmp.eq.s32.totalorder %s14, 1
    %p53 = por %p51, %p52
    %p54 = scmp.ne.s32.totalorder %s45, %s46
    %p55 = scmp.eq.s32.totalorder %s14, 0
    %p56 = por %p54, %p55
    %p57 = scmp.ne.s32.totalorder %s45, %s46
    %p58 = scmp.eq.s32.totalorder %s15, 1
    %p59 = por %p57, %p58
    %p61 = scmp.ne.s32.totalorder %s46, %s60
    %p62 = scmp.eq.s32.totalorder %s15, 0
    %p63 = por %p61, %p62
    %s65 = sadd.s32 %s64, 1
    %p68 = scmp.eq.s32.totalorder %s9, 1
    %p69 = scmp.ne.s32.totalorder %s64, %s66
    %p70 = scmp.eq.s32.totalorder %s9, 0
    %p71 = por %p69, %p70
    %p72 = scmp.ne.s32.totalorder %s64, %s66
    %p73 = scmp.eq.s32.totalorder %s14, 1
    %p74 = por %p72, %p73
    %p75 = scmp.ne.s32.totalorder %s66, %s67
    %p76 = scmp.eq.s32.totalorder %s14, 0
    %p77 = por %p75, %p76
    %p78 = scmp.ne.s32.totalorder %s66, %s67
    %p79 = scmp.eq.s32.totalorder %s15, 1
    %p80 = por %p78, %p79
    %p82 = scmp.ne.s32.totalorder %s67, %s81
    %p83 = scmp.eq.s32.totalorder %s15, 0
    %p84 = por %p82, %p83
    %s85 = ssub.s32 %s9, %s16
    %p86 = scmp.eq.s32.totalorder %s85, 0
    %s88 = sadd.s32 %s87, 1
    %s89 = scalar_select %p86, %s87, %s88
    %p92 = pneg %p86
    %p93 = scmp.eq.s32.totalorder %s9, 1
    %p94 = por %p92, %p93
    %p95 = scmp.ne.s32.totalorder %s87, %s90
    %p96 = scmp.eq.s32.totalorder %s9, 0
    %p97 = por %p95, %p96
    %p98 = scmp.ne.s32.totalorder %s87, %s90
    %p99 = scmp.eq.s32.totalorder %s14, 1
    %p100 = por %p98, %p99
    %p101 = scmp.ne.s32.totalorder %s90, %s91
    %p102 = scmp.eq.s32.totalorder %s14, 0
    %p103 = por %p101, %p102
    %p104 = scmp.ne.s32.totalorder %s90, %s91
    %p105 = scmp.eq.s32.totalorder %s15, 1
    %p106 = por %p104, %p105
    %p108 = scmp.ne.s32.totalorder %s91, %s107
    %p109 = scmp.eq.s32.totalorder %s15, 0
    %p110 = por %p108, %p109
    %p111 = scmp.le.s32.totalorder 1, %s9
    %p112 = scmp.lt.s32.totalorder %s9, 3
    %p113 = pnand %p111, %p112
    %p114 = pneg %p113
    // Predicated region
    $region9: #{tpu_custom_call.1} parent=5 // pred_check
      _
    $region10: #{tpu_custom_call.1} parent=5 // pred_check_branch
      %116 = sbr.rel (%p113) target = $region12
    $region11: #{tpu_custom_call.1} parent=5 // pred_region
      %s117 = ssub.s32 %s9, 1
      // Predicated region
      $region13: #{tpu_custom_call.1} parent=11 // pred_check
        %p118 = pneg %p56
      $region14: #{tpu_custom_call.1} parent=11 // pred_check_branch
        %120 = sbr.rel (%p118) target = $region16
      $region15: #{tpu_custom_call.1} parent=11 // pred_region
        _
      $region16: #{tpu_custom_call.1} parent=11 // pred_fallthru
        _
      // Predicated region
      $region17: #{tpu_custom_call.1} parent=11 // pred_check
        %p121 = pneg %p77
      $region18: #{tpu_custom_call.1} parent=11 // pred_check_branch
        %123 = sbr.rel (%p121) target = $region20
      $region19: #{tpu_custom_call.1} parent=11 // pred_region
        _
      $region20: #{tpu_custom_call.1} parent=11 // pred_fallthru
        _
    $region12: #{tpu_custom_call.1} parent=5 // pred_fallthru
      _
    %p124 = scmp.lt.s32.totalorder %s9, 2
    // Predicated region
    $region21: #{tpu_custom_call.1} parent=5 // pred_check
      %p125 = pneg %p124
    $region22: #{tpu_custom_call.1} parent=5 // pred_check_branch
      %127 = sbr.rel (%p125) target = $region24
    $region23: #{tpu_custom_call.1} parent=5 // pred_region
      // Predicated region
      $region25: #{tpu_custom_call.1} parent=23 // pred_check
        %p128 = pneg %p29
      $region26: #{tpu_custom_call.1} parent=23 // pred_check_branch
        %130 = sbr.rel (%p128) target = $region28
      $region27: #{tpu_custom_call.1} parent=23 // pred_region
        %p131 = scmp.lt.s32.totalorder %s9, 1
        %s132 = scalar_select %p131, %s9, 1
        %s133 = smul.addr %s132, 3
        %s134 = smul.addr %s133, 4
        %s135 = scalar_lea.vmem %s0, %s134
      $region28: #{tpu_custom_call.1} parent=23 // pred_fallthru
        _
    $region24: #{tpu_custom_call.1} parent=5 // pred_fallthru
      _
    %p136 = scmp.le.s32.totalorder 1, %s9
    %p137 = scmp.lt.s32.totalorder %s9, 3
    %p138 = pnand %p136, %p137
    %p139 = pneg %p138
    // Predicated region
    $region29: #{tpu_custom_call.1} parent=5 // pred_check
      _
    $region30: #{tpu_custom_call.1} parent=5 // pred_check_branch
      %141 = sbr.rel (%p138) target = $region32
    $region31: #{tpu_custom_call.1} parent=5 // pred_region
      %s142 = ssub.s32 %s9, 1
      %p143 = scmp.lt.s32.totalorder %s14, 1
      %s144 = scalar_select %p143, %s14, 1
      %s145 = smul.addr %s144, 3
      %s146 = smul.addr %s145, 4
      %s147 = scalar_lea.vmem %s0, %s146
      %p148 = pneg %p35
      %p149 = pneg %p32
      %p150 = pneg %p56
      %p151 = pneg %p53
      %p152 = pneg %p77
      %p153 = pneg %p74
      %p154 = pneg %p103
      %p155 = pneg %p100
      %p156 = scmp.lt.s32.totalorder %s14, 1
      %s157 = scalar_select %p156, %s14, 1
      %s158 = smul.addr %s157, 2
      %s159 = smul.addr %s158, 8
      %s160 = scalar_lea.vmem %s3, %s159
      %p161 = scmp.lt.s32.totalorder %s14, 1
      %s162 = scalar_select %p161, %s14, 1
      %s163 = smul.addr %s162, 3
      %s164 = smul.addr %s163, 4
      %s165 = scalar_lea.vmem %s0, %s164
      %p166 = scmp.lt.s32.totalorder %s14, 1
      %s167 = scalar_select %p166, %s14, 1
      %s168 = smul.addr %s167, 2
      %s169 = smul.addr %s168, 8
      %s170 = scalar_lea.vmem %s3, %s169
      %v171 = vld [vmem:[%s165] sm:$0x77]
      %v172 = vld [vmem:[%s165 + $0x8] sm:$0x7]
      %v173 = vld [vmem:[%s1] sm:$0x3f]
      %v174 = vld [vmem:[%s2] sm:$0x3f]
      %176 = vset.pattern.permute.xlu0 0
      %177 = vperm.xlu0 %176, %v174
      %v178 = vpop.permute.xlu0 %177
      %181 = vset.pattern.permute.xlu0 0
      %182 = vperm.xlu0 %181, %v173
      %v183 = vpop.permute.xlu0 %182
      %v186 = vlaneseq
      %v187 = vshrl.u32 %v186, 7
      %v188 = vsub.s32 0, %v187
      %v189 = vrot.slane %v171, %v188
      %v190 = vlaneseq
      %v191 = vshrl.u32 %v190, 7
      %v192 = vsub.s32 4, %v191
      %v193 = vrot.slane %v171, %v192
      %v196 = vlaneseq
      %v197 = vshrl.u32 %v196, 7
      %v198 = vsub.s32 0, %v197
      %v199 = vrot.slane %v189, %v198
      %v200 = vlaneseq
      %v201 = vshrl.u32 %v200, 7
      %v202 = vsub.s32 0, %v201
      %v203 = vrot.slane %v193, %v202
      %v204 = vmul.f32 %v183, %v199
      %v205 = vmul.f32 %v183, %v203
      %v206 = vadd.f32 %v178, %v204
      %v207 = vadd.f32 %v178, %v205
      %208 = vset.pattern.permute.xlu0 1
      %209 = vperm.xlu0 %208, %v173
      %v210 = vpop.permute.xlu0 %209
      %v212 = vlaneseq
      %v213 = vshrl.u32 %v212, 7
      %v214 = vsub.s32 1, %v213
      %v215 = vrot.slane %v171, %v214
      %v216 = vlaneseq
      %v217 = vshrl.u32 %v216, 7
      %v218 = vsub.s32 5, %v217
      %v219 = vrot.slane %v171, %v218
      %v222 = vlaneseq
      %v223 = vshrl.u32 %v222, 7
      %v224 = vsub.s32 1, %v223
      %v225 = vrot.slane %v215, %v224
      %v226 = vlaneseq
      %v227 = vshrl.u32 %v226, 7
      %v228 = vsub.s32 1, %v227
      %v229 = vrot.slane %v219, %v228
      %v230 = vmul.f32 %v210, %v225
      %v231 = vmul.f32 %v210, %v229
      %v232 = vadd.f32 %v206, %v230
      %v233 = vadd.f32 %v207, %v231
      %234 = vset.pattern.permute.xlu0 2
      %235 = vperm.xlu0 %234, %v173
      %v236 = vpop.permute.xlu0 %235
      %v238 = vlaneseq
      %v239 = vshrl.u32 %v238, 7
      %v240 = vsub.s32 2, %v239
      %v241 = vrot.slane %v171, %v240
      %v242 = vlaneseq
      %v243 = vshrl.u32 %v242, 7
      %v244 = vsub.s32 6, %v243
      %v245 = vrot.slane %v171, %v244
      %v248 = vlaneseq
      %v249 = vshrl.u32 %v248, 7
      %v250 = vsub.s32 2, %v249
      %v251 = vrot.slane %v241, %v250
      %v252 = vlaneseq
      %v253 = vshrl.u32 %v252, 7
      %v254 = vsub.s32 2, %v253
      %v255 = vrot.slane %v245, %v254
      %v256 = vmul.f32 %v236, %v251
      %v257 = vmul.f32 %v236, %v255
      %v258 = vadd.f32 %v232, %v256
      %v259 = vadd.f32 %v233, %v257
      %260 = vset.pattern.permute.xlu0 3
      %261 = vperm.xlu0 %260, %v173
      %v262 = vpop.permute.xlu0 %261
      %v265 = vlaneseq
      %v266 = vshrl.u32 %v265, 7
      %v267 = vsub.s32 0, %v266
      %v268 = vrot.slane %v172, %v267
      %v270 = vlaneseq
      %v271 = vshrl.u32 %v270, 7
      %v272 = vsub.s32 0, %v271
      %v273 = vrot.slane %v268, %v272
      %v274 = vmul.f32 %v262, %v199
      %v275 = vmul.f32 %v262, %v203
      %v276 = vmul.f32 %v262, %v273
      %280 = vrot.lane.b32.xlu0 %v274, 127
      %v281 = vpop.permute.xlu0 %280
      %282 = vrot.lane.b32.xlu0 %v275, 127
      %v283 = vpop.permute.xlu0 %282
      %284 = vrot.lane.b32.xlu0 %v276, 127
      %v285 = vpop.permute.xlu0 %284
      %vm286 = vcmask 1039360
      %v287 = vsel %vm286, %v281, %v283
      %v288 = vsel %vm286, %v283, %v285
      %v291 = vadd.f32 %v258, %v287
      %v292 = vadd.f32 %v259, %v288
      %293 = vset.pattern.permute.xlu0 4
      %294 = vperm.xlu0 %293, %v173
      %v295 = vpop.permute.xlu0 %294
      %v297 = vlaneseq
      %v298 = vshrl.u32 %v297, 7
      %v299 = vsub.s32 1, %v298
      %v300 = vrot.slane %v172, %v299
      %v302 = vlaneseq
      %v303 = vshrl.u32 %v302, 7
      %v304 = vsub.s32 1, %v303
      %v305 = vrot.slane %v300, %v304
      %v306 = vmul.f32 %v295, %v225
      %v307 = vmul.f32 %v295, %v229
      %v308 = vmul.f32 %v295, %v305
      %312 = vrot.lane.b32.xlu0 %v306, 127
      %v313 = vpop.permute.xlu0 %312
      %314 = vrot.lane.b32.xlu0 %v307, 127
      %v315 = vpop.permute.xlu0 %314
      %316 = vrot.lane.b32.xlu0 %v308, 127
      %v317 = vpop.permute.xlu0 %316
      %v318 = vsel %vm286, %v313, %v315
      %v319 = vsel %vm286, %v315, %v317
      %v322 = vadd.f32 %v291, %v318
      %v323 = vadd.f32 %v292, %v319
      %324 = vset.pattern.permute.xlu0 5
      %325 = vperm.xlu0 %324, %v173
      %v326 = vpop.permute.xlu0 %325
      %v328 = vlaneseq
      %v329 = vshrl.u32 %v328, 7
      %v330 = vsub.s32 2, %v329
      %v331 = vrot.slane %v172, %v330
      %v333 = vlaneseq
      %v334 = vshrl.u32 %v333, 7
      %v335 = vsub.s32 2, %v334
      %v336 = vrot.slane %v331, %v335
      %v337 = vmul.f32 %v326, %v251
      %v338 = vmul.f32 %v326, %v255
      %v339 = vmul.f32 %v326, %v336
      %343 = vrot.lane.b32.xlu0 %v337, 127
      %v344 = vpop.permute.xlu0 %343
      %345 = vrot.lane.b32.xlu0 %v338, 127
      %v346 = vpop.permute.xlu0 %345
      %347 = vrot.lane.b32.xlu0 %v339, 127
      %v348 = vpop.permute.xlu0 %347
      %v349 = vsel %vm286, %v344, %v346
      %v350 = vsel %vm286, %v346, %v348
      %v353 = vadd.f32 %v322, %v349
      %v354 = vadd.f32 %v323, %v350
      %355 = vset.pattern.permute.xlu0 6
      %356 = vperm.xlu0 %355, %v173
      %v357 = vpop.permute.xlu0 %356
      %v359 = vmul.f32 %v357, %v199
      %v360 = vmul.f32 %v357, %v203
      %v361 = vmul.f32 %v357, %v273
      %365 = vrot.lane.b32.xlu0 %v359, 126
      %v366 = vpop.permute.xlu0 %365
      %367 = vrot.lane.b32.xlu0 %v360, 126
      %v368 = vpop.permute.xlu0 %367
      %369 = vrot.lane.b32.xlu0 %v361, 126
      %v370 = vpop.permute.xlu0 %369
      %vm371 = vcmask 1031168
      %v372 = vsel %vm371, %v366, %v368
      %v373 = vsel %vm371, %v368, %v370
      %v376 = vadd.f32 %v353, %v372
      %v377 = vadd.f32 %v354, %v373
      %378 = vset.pattern.permute.xlu0 7
      %379 = vperm.xlu0 %378, %v173
      %v380 = vpop.permute.xlu0 %379
      %v382 = vmul.f32 %v380, %v225
      %v383 = vmul.f32 %v380, %v229
      %v384 = vmul.f32 %v380, %v305
      %388 = vrot.lane.b32.xlu0 %v382, 126
      %v389 = vpop.permute.xlu0 %388
      %390 = vrot.lane.b32.xlu0 %v383, 126
      %v391 = vpop.permute.xlu0 %390
      %392 = vrot.lane.b32.xlu0 %v384, 126
      %v393 = vpop.permute.xlu0 %392
      %v394 = vsel %vm371, %v389, %v391
      %v395 = vsel %vm371, %v391, %v393
      %v398 = vadd.f32 %v376, %v394
      %v399 = vadd.f32 %v377, %v395
      %400 = vset.pattern.permute.xlu0 8
      %401 = vperm.xlu0 %400, %v173
      %v402 = vpop.permute.xlu0 %401
      %v404 = vmul.f32 %v402, %v251
      %v405 = vmul.f32 %v402, %v255
      %v406 = vmul.f32 %v402, %v336
      %410 = vrot.lane.b32.xlu0 %v404, 126
      %v411 = vpop.permute.xlu0 %410
      %412 = vrot.lane.b32.xlu0 %v405, 126
      %v413 = vpop.permute.xlu0 %412
      %414 = vrot.lane.b32.xlu0 %v406, 126
      %v415 = vpop.permute.xlu0 %414
      %v416 = vsel %vm371, %v411, %v413
      %v417 = vsel %vm371, %v413, %v415
      %v420 = vadd.f32 %v398, %v416
      %v421 = vadd.f32 %v399, %v417
      %422 = vset.pattern.permute.xlu0 9
      %423 = vperm.xlu0 %422, %v173
      %v424 = vpop.permute.xlu0 %423
      %v426 = vmul.f32 %v424, %v199
      %v427 = vmul.f32 %v424, %v203
      %v428 = vmul.f32 %v424, %v273
      %432 = vrot.lane.b32.xlu0 %v426, 112
      %v433 = vpop.permute.xlu0 %432
      %434 = vrot.lane.b32.xlu0 %v427, 112
      %v435 = vpop.permute.xlu0 %434
      %436 = vrot.lane.b32.xlu0 %v428, 112
      %v437 = vpop.permute.xlu0 %436
      %vm438 = vcmask 916480
      %v439 = vsel %vm438, %v433, %v435
      %v440 = vsel %vm438, %v435, %v437
      %v443 = vadd.f32 %v420, %v439
      %v444 = vadd.f32 %v421, %v440
      %445 = vset.pattern.permute.xlu0 10
      %446 = vperm.xlu0 %445, %v173
      %v447 = vpop.permute.xlu0 %446
      %v449 = vmul.f32 %v447, %v225
      %v450 = vmul.f32 %v447, %v229
      %v451 = vmul.f32 %v447, %v305
      %455 = vrot.lane.b32.xlu0 %v449, 112
      %v456 = vpop.permute.xlu0 %455
      %457 = vrot.lane.b32.xlu0 %v450, 112
      %v458 = vpop.permute.xlu0 %457
      %459 = vrot.lane.b32.xlu0 %v451, 112
      %v460 = vpop.permute.xlu0 %459
      %v461 = vsel %vm438, %v456, %v458
      %v462 = vsel %vm438, %v458, %v460
      %v465 = vadd.f32 %v443, %v461
      %v466 = vadd.f32 %v444, %v462
      %467 = vset.pattern.permute.xlu0 11
      %468 = vperm.xlu0 %467, %v173
      %v469 = vpop.permute.xlu0 %468
      %v471 = vmul.f32 %v469, %v251
      %v472 = vmul.f32 %v469, %v255
      %v473 = vmul.f32 %v469, %v336
      %477 = vrot.lane.b32.xlu0 %v471, 112
      %v478 = vpop.permute.xlu0 %477
      %479 = vrot.lane.b32.xlu0 %v472, 112
      %v480 = vpop.permute.xlu0 %479
      %481 = vrot.lane.b32.xlu0 %v473, 112
      %v482 = vpop.permute.xlu0 %481
      %v483 = vsel %vm438, %v478, %v480
      %v484 = vsel %vm438, %v480, %v482
      %v487 = vadd.f32 %v465, %v483
      %v488 = vadd.f32 %v466, %v484
      %489 = vset.pattern.permute.xlu0 12
      %490 = vperm.xlu0 %489, %v173
      %v491 = vpop.permute.xlu0 %490
      %v493 = vmul.f32 %v491, %v199
      %v494 = vmul.f32 %v491, %v203
      %v495 = vmul.f32 %v491, %v273
      %499 = vrot.lane.b32.xlu0 %v493, 111
      %v500 = vpop.permute.xlu0 %499
      %501 = vrot.lane.b32.xlu0 %v494, 111
      %v502 = vpop.permute.xlu0 %501
      %503 = vrot.lane.b32.xlu0 %v495, 111
      %v504 = vpop.permute.xlu0 %503
      %vm505 = vcmask 908288
      %v506 = vsel %vm505, %v500, %v502
      %v507 = vsel %vm505, %v502, %v504
      %v510 = vadd.f32 %v487, %v506
      %v511 = vadd.f32 %v488, %v507
      %512 = vset.pattern.permute.xlu0 13
      %513 = vperm.xlu0 %512, %v173
      %v514 = vpop.permute.xlu0 %513
      %v516 = vmul.f32 %v514, %v225
      %v517 = vmul.f32 %v514, %v229
      %v518 = vmul.f32 %v514, %v305
      %522 = vrot.lane.b32.xlu0 %v516, 111
      %v523 = vpop.permute.xlu0 %522
      %524 = vrot.lane.b32.xlu0 %v517, 111
      %v525 = vpop.permute.xlu0 %524
      %526 = vrot.lane.b32.xlu0 %v518, 111
      %v527 = vpop.permute.xlu0 %526
      %v528 = vsel %vm505, %v523, %v525
      %v529 = vsel %vm505, %v525, %v527
      %v532 = vadd.f32 %v510, %v528
      %v533 = vadd.f32 %v511, %v529
      %534 = vset.pattern.permute.xlu0 14
      %535 = vperm.xlu0 %534, %v173
      %v536 = vpop.permute.xlu0 %535
      %v538 = vmul.f32 %v536, %v251
      %v539 = vmul.f32 %v536, %v255
      %v540 = vmul.f32 %v536, %v336
      %544 = vrot.lane.b32.xlu0 %v538, 111
      %v545 = vpop.permute.xlu0 %544
      %546 = vrot.lane.b32.xlu0 %v539, 111
      %v547 = vpop.permute.xlu0 %546
      %548 = vrot.lane.b32.xlu0 %v540, 111
      %v549 = vpop.permute.xlu0 %548
      %v550 = vsel %vm505, %v545, %v547
      %v551 = vsel %vm505, %v547, %v549
      %v554 = vadd.f32 %v532, %v550
      %v555 = vadd.f32 %v533, %v551
      %556 = vset.pattern.permute.xlu0 15
      %557 = vperm.xlu0 %556, %v173
      %v558 = vpop.permute.xlu0 %557
      %v560 = vmul.f32 %v558, %v199
      %v561 = vmul.f32 %v558, %v203
      %v562 = vmul.f32 %v558, %v273
      %566 = vrot.lane.b32.xlu0 %v560, 110
      %v567 = vpop.permute.xlu0 %566
      %568 = vrot.lane.b32.xlu0 %v561, 110
      %v569 = vpop.permute.xlu0 %568
      %570 = vrot.lane.b32.xlu0 %v562, 110
      %v571 = vpop.permute.xlu0 %570
      %vm572 = vcmask 900096
      %v573 = vsel %vm572, %v567, %v569
      %v574 = vsel %vm572, %v569, %v571
      %v577 = vadd.f32 %v554, %v573
      %v578 = vadd.f32 %v555, %v574
      %579 = vset.pattern.permute.xlu0 16
      %580 = vperm.xlu0 %579, %v173
      %v581 = vpop.permute.xlu0 %580
      %v583 = vmul.f32 %v581, %v225
      %v584 = vmul.f32 %v581, %v229
      %v585 = vmul.f32 %v581, %v305
      %589 = vrot.lane.b32.xlu0 %v583, 110
      %v590 = vpop.permute.xlu0 %589
      %591 = vrot.lane.b32.xlu0 %v584, 110
      %v592 = vpop.permute.xlu0 %591
      %593 = vrot.lane.b32.xlu0 %v585, 110
      %v594 = vpop.permute.xlu0 %593
      %v595 = vsel %vm572, %v590, %v592
      %v596 = vsel %vm572, %v592, %v594
      %v599 = vadd.f32 %v577, %v595
      %v600 = vadd.f32 %v578, %v596
      %601 = vset.pattern.permute.xlu0 17
      %602 = vperm.xlu0 %601, %v173
      %v603 = vpop.permute.xlu0 %602
      %v605 = vmul.f32 %v603, %v251
      %v606 = vmul.f32 %v603, %v255
      %v607 = vmul.f32 %v603, %v336
      %611 = vrot.lane.b32.xlu0 %v605, 110
      %v612 = vpop.permute.xlu0 %611
      %613 = vrot.lane.b32.xlu0 %v606, 110
      %v614 = vpop.permute.xlu0 %613
      %615 = vrot.lane.b32.xlu0 %v607, 110
      %v616 = vpop.permute.xlu0 %615
      %v617 = vsel %vm572, %v612, %v614
      %v618 = vsel %vm572, %v614, %v616
      %v621 = vadd.f32 %v599, %v617
      %v622 = vadd.f32 %v600, %v618
      %623 = vset.pattern.permute.xlu0 18
      %624 = vperm.xlu0 %623, %v173
      %v625 = vpop.permute.xlu0 %624
      %v627 = vmul.f32 %v625, %v199
      %v628 = vmul.f32 %v625, %v203
      %v629 = vmul.f32 %v625, %v273
      %633 = vrot.lane.b32.xlu0 %v627, 96
      %v634 = vpop.permute.xlu0 %633
      %635 = vrot.lane.b32.xlu0 %v628, 96
      %v636 = vpop.permute.xlu0 %635
      %637 = vrot.lane.b32.xlu0 %v629, 96
      %v638 = vpop.permute.xlu0 %637
      %vm639 = vcmask 785408
      %v640 = vsel %vm639, %v634, %v636
      %v641 = vsel %vm639, %v636, %v638
      %v644 = vadd.f32 %v621, %v640
      %v645 = vadd.f32 %v622, %v641
      %646 = vset.pattern.permute.xlu0 19
      %647 = vperm.xlu0 %646, %v173
      %v648 = vpop.permute.xlu0 %647
      %v650 = vmul.f32 %v648, %v225
      %v651 = vmul.f32 %v648, %v229
      %v652 = vmul.f32 %v648, %v305
      %656 = vrot.lane.b32.xlu0 %v650, 96
      %v657 = vpop.permute.xlu0 %656
      %658 = vrot.lane.b32.xlu0 %v651, 96
      %v659 = vpop.permute.xlu0 %658
      %660 = vrot.lane.b32.xlu0 %v652, 96
      %v661 = vpop.permute.xlu0 %660
      %v662 = vsel %vm639, %v657, %v659
      %v663 = vsel %vm639, %v659, %v661
      %v666 = vadd.f32 %v644, %v662
      %v667 = vadd.f32 %v645, %v663
      %668 = vset.pattern.permute.xlu0 20
      %669 = vperm.xlu0 %668, %v173
      %v670 = vpop.permute.xlu0 %669
      %v672 = vmul.f32 %v670, %v251
      %v673 = vmul.f32 %v670, %v255
      %v674 = vmul.f32 %v670, %v336
      %678 = vrot.lane.b32.xlu0 %v672, 96
      %v679 = vpop.permute.xlu0 %678
      %680 = vrot.lane.b32.xlu0 %v673, 96
      %v681 = vpop.permute.xlu0 %680
      %682 = vrot.lane.b32.xlu0 %v674, 96
      %v683 = vpop.permute.xlu0 %682
      %v684 = vsel %vm639, %v679, %v681
      %v685 = vsel %vm639, %v681, %v683
      %v688 = vadd.f32 %v666, %v684
      %v689 = vadd.f32 %v667, %v685
      %690 = vset.pattern.permute.xlu0 21
      %691 = vperm.xlu0 %690, %v173
      %v692 = vpop.permute.xlu0 %691
      %v694 = vmul.f32 %v692, %v199
      %v695 = vmul.f32 %v692, %v203
      %v696 = vmul.f32 %v692, %v273
      %700 = vrot.lane.b32.xlu0 %v694, 95
      %v701 = vpop.permute.xlu0 %700
      %702 = vrot.lane.b32.xlu0 %v695, 95
      %v703 = vpop.permute.xlu0 %702
      %704 = vrot.lane.b32.xlu0 %v696, 95
      %v705 = vpop.permute.xlu0 %704
      %vm706 = vcmask 777216
      %v707 = vsel %vm706, %v701, %v703
      %v708 = vsel %vm706, %v703, %v705
      %v711 = vadd.f32 %v688, %v707
      %v712 = vadd.f32 %v689, %v708
      %713 = vset.pattern.permute.xlu0 22
      %714 = vperm.xlu0 %713, %v173
      %v715 = vpop.permute.xlu0 %714
      %v717 = vmul.f32 %v715, %v225
      %v718 = vmul.f32 %v715, %v229
      %v719 = vmul.f32 %v715, %v305
      %723 = vrot.lane.b32.xlu0 %v717, 95
      %v724 = vpop.permute.xlu0 %723
      %725 = vrot.lane.b32.xlu0 %v718, 95
      %v726 = vpop.permute.xlu0 %725
      %727 = vrot.lane.b32.xlu0 %v719, 95
      %v728 = vpop.permute.xlu0 %727
      %v729 = vsel %vm706, %v724, %v726
      %v730 = vsel %vm706, %v726, %v728
      %v733 = vadd.f32 %v711, %v729
      %v734 = vadd.f32 %v712, %v730
      %735 = vset.pattern.permute.xlu0 23
      %736 = vperm.xlu0 %735, %v173
      %v737 = vpop.permute.xlu0 %736
      %v739 = vmul.f32 %v737, %v251
      %v740 = vmul.f32 %v737, %v255
      %v741 = vmul.f32 %v737, %v336
      %745 = vrot.lane.b32.xlu0 %v739, 95
      %v746 = vpop.permute.xlu0 %745
      %747 = vrot.lane.b32.xlu0 %v740, 95
      %v748 = vpop.permute.xlu0 %747
      %749 = vrot.lane.b32.xlu0 %v741, 95
      %v750 = vpop.permute.xlu0 %749
      %v751 = vsel %vm706, %v746, %v748
      %v752 = vsel %vm706, %v748, %v750
      %v755 = vadd.f32 %v733, %v751
      %v756 = vadd.f32 %v734, %v752
      %757 = vset.pattern.permute.xlu0 24
      %758 = vperm.xlu0 %757, %v173
      %v759 = vpop.permute.xlu0 %758
      %v761 = vmul.f32 %v759, %v199
      %v762 = vmul.f32 %v759, %v203
      %v763 = vmul.f32 %v759, %v273
      %767 = vrot.lane.b32.xlu0 %v761, 94
      %v768 = vpop.permute.xlu0 %767
      %769 = vrot.lane.b32.xlu0 %v762, 94
      %v770 = vpop.permute.xlu0 %769
      %771 = vrot.lane.b32.xlu0 %v763, 94
      %v772 = vpop.permute.xlu0 %771
      %vm773 = vcmask 769024
      %v774 = vsel %vm773, %v768, %v770
      %v775 = vsel %vm773, %v770, %v772
      %v778 = vadd.f32 %v755, %v774
      %v779 = vadd.f32 %v756, %v775
      %780 = vset.pattern.permute.xlu0 25
      %781 = vperm.xlu0 %780, %v173
      %v782 = vpop.permute.xlu0 %781
      %v784 = vmul.f32 %v782, %v225
      %v785 = vmul.f32 %v782, %v229
      %v786 = vmul.f32 %v782, %v305
      %790 = vrot.lane.b32.xlu0 %v784, 94
      %v791 = vpop.permute.xlu0 %790
      %792 = vrot.lane.b32.xlu0 %v785, 94
      %v793 = vpop.permute.xlu0 %792
      %794 = vrot.lane.b32.xlu0 %v786, 94
      %v795 = vpop.permute.xlu0 %794
      %v796 = vsel %vm773, %v791, %v793
      %v797 = vsel %vm773, %v793, %v795
      %v800 = vadd.f32 %v778, %v796
      %v801 = vadd.f32 %v779, %v797
      %802 = vset.pattern.permute.xlu0 26
      %803 = vperm.xlu0 %802, %v173
      %v804 = vpop.permute.xlu0 %803
      %v806 = vmul.f32 %v804, %v251
      %v807 = vmul.f32 %v804, %v255
      %v808 = vmul.f32 %v804, %v336
      %812 = vrot.lane.b32.xlu0 %v806, 94
      %v813 = vpop.permute.xlu0 %812
      %814 = vrot.lane.b32.xlu0 %v807, 94
      %v815 = vpop.permute.xlu0 %814
      %816 = vrot.lane.b32.xlu0 %v808, 94
      %v817 = vpop.permute.xlu0 %816
      %v818 = vsel %vm773, %v813, %v815
      %v819 = vsel %vm773, %v815, %v817
      %v822 = vadd.f32 %v800, %v818
      %v823 = vadd.f32 %v801, %v819
      %824 = vst [vmem:[%s170] sm:$0x3f] %v822
      %825 = vst [vmem:[%s170 + $0x8] sm:$0x3f] %v823
      %p826 = scmp.lt.s32.totalorder %s14, 1
      %s827 = scalar_select %p826, %s14, 1
      %s828 = smul.addr %s827, 2
      %s829 = smul.addr %s828, 8
      %s830 = scalar_lea.vmem %s3, %s829
      // Predicated region
      $region33: #{tpu_custom_call.1} parent=31 // pred_check
        %p831 = pneg %p100
      $region34: #{tpu_custom_call.1} parent=31 // pred_check_branch
        %833 = sbr.rel (%p831) target = $region36
      $region35: #{tpu_custom_call.1} parent=31 // pred_region
        _
      $region36: #{tpu_custom_call.1} parent=31 // pred_fallthru
        _
    $region32: #{tpu_custom_call.1} parent=5 // pred_fallthru
      _
    %p834 = scmp.le.s32.totalorder 2, %s9
    // Predicated region
    $region37: #{tpu_custom_call.1} parent=5 // pred_check
      %p835 = pneg %p834
    $region38: #{tpu_custom_call.1} parent=5 // pred_check_branch
      %837 = sbr.rel (%p835) target = $region40
    $region39: #{tpu_custom_call.1} parent=5 // pred_region
      %s838 = ssub.s32 %s9, 2
      // Predicated region
      $region41: #{tpu_custom_call.1} parent=39 // pred_check
        %p839 = pneg %p106
      $region42: #{tpu_custom_call.1} parent=39 // pred_check_branch
        %841 = sbr.rel (%p839) target = $region44
      $region43: #{tpu_custom_call.1} parent=39 // pred_region
        %p842 = scmp.lt.s32.totalorder %s15, 1
        %s843 = scalar_select %p842, %s15, 1
        %s844 = smul.addr %s843, 2
        %s845 = smul.addr %s844, 8
        %s846 = scalar_lea.vmem %s3, %s845
      $region44: #{tpu_custom_call.1} parent=39 // pred_fallthru
        _
    $region40: #{tpu_custom_call.1} parent=5 // pred_fallthru
      _
  $region6: #{tpu_custom_call.1} parent=0 // loop_footer
    %s13 = sadd.s32 1, %s9
  $region7: #{tpu_custom_call.1} parent=0 // loop_footer_branch
    %8 = sbr.rel target = $region3
  $region8: #{tpu_custom_call.1} parent=0 // loop_exit
    _

</llo_original>
